<compile_context>
chip_gen: v5e
topology: v5e:2x2
jax: 0.10.0
libtpu: 0.0.40
codegen_flags: <defaults>
</compile_context>

<pallas_src>
import functools
import math

import jax
import jax.numpy as jnp
from jax.experimental import pallas as pl
from jax.experimental.pallas import tpu as pltpu


def _round_up(n: int, m: int) -> int:
    return ((n + m - 1) // m) * m


def _tpu_generation() -> int:
    """Best-effort TPU generation from device_kind; 0 if unknown."""
    try:
        kind = jax.devices()[0].device_kind.lower()
    except Exception:
        return 0
    for g in (7, 6, 5, 4):
        if f"v{g}" in kind:
            return g
    return 0


def _vmem_bytes(tile_b, tile_n, d_in, kd, mxu_isz, rbf_isz, out_isz):
    """Rough VMEM footprint (double-buffered blocks + in-kernel slabs)."""
    x_bytes = 2 * tile_b * d_in * 4                   # x tile, f32, double-buffered
    c_bytes = 2 * kd * rbf_isz                        # replicated centers
    w_bytes = 2 * kd * tile_n * mxu_isz               # weight tile
    bias_bytes = 2 * tile_n * 4
    out_bytes = 2 * tile_b * tile_n * out_isz         # output tile
    phi_bytes = 3 * tile_b * kd * rbf_isz             # x_rep / diff / phi live ranges
    if rbf_isz != mxu_isz:
        phi_bytes += tile_b * kd * mxu_isz            # phi cast for the MXU
    acc_bytes = tile_b * tile_n * 4                   # f32 matmul result
    return x_bytes + c_bytes + w_bytes + bias_bytes + out_bytes + phi_bytes + acc_bytes


def _choose_tiles(b_tokens, d_in, kd, d_out_128, budget,
                  mxu_isz, rbf_isz, out_isz, sublane):
    def fits(tb, tn):
        return _vmem_bytes(tb, tn, d_in, kd, mxu_isz, rbf_isz, out_isz) <= budget

    tb_nominal = min(512, _round_up(max(b_tokens, 1), sublane))

    # ---- output-column tile: prefer a single resident tile (n_j == 1) ----
    if fits(tb_nominal, d_out_128):
        tile_n = d_out_128
    else:
        tile_n = None
        # multiples of 128 that divide d_out_128 (no extra column padding)
        for t in range(d_out_128 - 128, 0, -128):
            if d_out_128 % t == 0 and fits(tb_nominal, t):
                tile_n = t
                break
        if tile_n is None:
            # fall back to the largest multiple of 128 that fits (pad columns)
            t = d_out_128
            while t > 128 and not fits(tb_nominal, t):
                t -= 128
            tile_n = max(t, 128)
    d_out_pad = _round_up(d_out_128, tile_n)
    n_j = d_out_pad // tile_n

    # ---- token tile: bigger when n_j > 1 so the weight swap is hidden ----
    tb_cap = 1024 if n_j > 1 else 512
    tile_b = min(tb_cap, _round_up(max(b_tokens, 1), sublane))
    while tile_b > sublane and not fits(tile_b, tile_n):
        tile_b = max(sublane, _round_up(tile_b // 2, sublane))
    # cap token-padding waste at ~12.5% (shrinking tile_b only helps VMEM)
    def waste(tb):
        return _round_up(b_tokens, tb) - b_tokens
    if b_tokens > 0 and waste(tile_b) * 8 > b_tokens:
        for cand in range(tile_b, sublane - 1, -sublane):
            if waste(cand) * 8 <= b_tokens:
                tile_b = cand
                break
        else:
            tile_b = sublane

    return tile_b, tile_n, d_out_pad, n_j


def _kan_kernel(x_ref, crep_ref, w_ref, b_ref, o_ref, *,
                num_grids, sqrt_gamma, rbf_dtype, mxu_dtype):
    # x_ref:    (TB, D_in)     f32 tile of tokens
    # crep_ref: (1, K*D_in)    grid-major centers, pre-scaled by sqrt(gamma), rbf_dtype
    # w_ref:    (K*D_in, TN)   weights (mxu_dtype)
    # b_ref:    (1, TN)        f32 bias slice
    # o_ref:    (TB, TN)       output tile (out_dtype)
    #
    # gamma is folded into a pre-scale: phi = exp(-(sqrt(g)*x - sqrt(g)*c)^2).
    xs = (x_ref[...] * sqrt_gamma).astype(rbf_dtype)        # small (TB, D_in) tile

    # Grid-major lane replication: x_rep[:, g*D_in + i] = xs[:, i].
    # concatenate lowers to a single lane-copy (tpu.concatenate); a
    # broadcast+reshape of a (TB, K, D_in) slab would need a minor-dim reshape
    # relayout in Mosaic, so the concat form is kept deliberately.
    x_rep = jnp.concatenate([xs] * num_grids, axis=1)       # (TB, K*D_in)

    diff = x_rep - crep_ref[...]                            # rbf_dtype (bf16 on v6e/v7x)
    phi = jnp.exp(-(diff * diff))                           # EUP exp, rbf_dtype

    acc = jnp.dot(phi.astype(mxu_dtype), w_ref[...],
                  preferred_element_type=jnp.float32)       # MXU, f32 accumulate
    o_ref[...] = (acc + b_ref[...]).astype(o_ref.dtype)


def faster_kan_forward(x, centers, weight, bias, *, gamma,
                       mxu_dtype=jnp.bfloat16, rbf_dtype=None,
                       out_dtype=jnp.float32):
    """x: (..., D_in) -> (..., D_out).

    weight: (K*D_in, D_out) grid-major rows, centers: (K,), bias: (D_out,).
    mxu_dtype: matmul operand dtype (bf16 default on ALL generations; f32 only
               as a numerics-debug path).
    rbf_dtype: dtype for the diff/exp slab; None -> bf16 on v6e/v7x, f32 else.
    out_dtype: output dtype (bf16 halves the dominant HBM writeback stream).
    """
    gen = _tpu_generation()
    if rbf_dtype is None:
        rbf_dtype = jnp.bfloat16 if gen in (6, 7) else jnp.float32
    # Generation-aware VMEM budget (v7x: 64 MiB physical -> 48 MiB target;
    # v4/v5e/v6e: 128 MiB physical -> 100 MiB; unknown -> conservative 48 MiB).
    budget = (100 << 20) if gen in (4, 5, 6) else (48 << 20)

    orig_shape = x.shape
    d_in = orig_shape[-1]
    x2 = x.reshape(-1, d_in).astype(jnp.float32)            # (B, D_in)
    b_tokens = x2.shape[0]
    k = int(centers.shape[0])
    kd = k * d_in
    d_out = weight.shape[1]
    assert weight.shape[0] == kd, "weight must be (K*D_in, D_out), grid-major rows"

    mxu_isz = jnp.dtype(mxu_dtype).itemsize
    rbf_isz = jnp.dtype(rbf_dtype).itemsize
    out_isz = jnp.dtype(out_dtype).itemsize
    sublane = 16 if out_isz == 2 else 8                      # bf16 output packs 2 rows/sublane

    d_out_128 = _round_up(d_out, 128)
    tile_b, tile_n, d_out_pad, n_j = _choose_tiles(
        b_tokens, d_in, kd, d_out_128, budget, mxu_isz, rbf_isz, out_isz, sublane)

    # ---- token (row) padding: sliced away after the call ----
    b_pad = _round_up(b_tokens, tile_b)
    if b_pad != b_tokens:
        x2 = jnp.pad(x2, ((0, b_pad - b_tokens), (0, 0)))
    n_i = b_pad // tile_b

    # ---- parameter prep (plain JAX glue) ----
    w_p = weight.astype(mxu_dtype)
    b_p = bias.astype(jnp.float32)
    if d_out_pad != d_out:
        w_p = jnp.pad(w_p, ((0, 0), (0, d_out_pad - d_out)))
        b_p = jnp.pad(b_p, (0, d_out_pad - d_out))
    bias_row = b_p.reshape(1, d_out_pad)

    # Grid-major replicated centers, pre-scaled by sqrt(gamma):
    #   crep[0, g*D_in + i] = sqrt(gamma) * centers[g].
    sqrt_gamma = float(math.sqrt(float(gamma)))
    centers_rep = (jnp.repeat(centers.astype(jnp.float32), d_in) * sqrt_gamma
                   ).astype(rbf_dtype).reshape(1, kd)

    kernel = functools.partial(_kan_kernel, num_grids=k, sqrt_gamma=sqrt_gamma,
                               rbf_dtype=rbf_dtype, mxu_dtype=mxu_dtype)

    cost = pl.CostEstimate(
        flops=2 * b_pad * kd * d_out_pad,
        transcendentals=n_j * b_pad * kd,                 # exp recomputed per column tile
        bytes_accessed=int(n_j * b_pad * d_in * 4         # x re-read per column tile
                           + kd * rbf_isz                 # centers (once, resident)
                           + kd * d_out_pad * mxu_isz     # weight (read once total)
                           + d_out_pad * 4
                           + b_pad * d_out_pad * out_isz),
    )

    out = pl.pallas_call(
        kernel,
        out_shape=jax.ShapeDtypeStruct((b_pad, d_out_pad), out_dtype),
        grid_spec=pltpu.PrefetchScalarGridSpec(
            num_scalar_prefetch=0,
            # Outer axis = output-column tile, inner axis = token tile, so the
            # (K*D_in, TN) weight block stays resident across the inner loop
            # (and with n_j == 1 -- the common case -- the RBF slab is computed
            # exactly once per token tile and the weight is read from HBM once).
            grid=(n_j, n_i),
            in_specs=[
                pl.BlockSpec((tile_b, d_in), lambda j, i: (i, 0)),   # x
                pl.BlockSpec((1, kd), lambda j, i: (0, 0)),          # centers
                pl.BlockSpec((kd, tile_n), lambda j, i: (0, j)),     # weight
                pl.BlockSpec((1, tile_n), lambda j, i: (0, j)),      # bias
            ],
            out_specs=pl.BlockSpec((tile_b, tile_n), lambda j, i: (i, j)),
        ),
        compiler_params=pltpu.CompilerParams(
            dimension_semantics=("parallel", "parallel"),
            vmem_limit_bytes=int(budget),
        ),
        cost_estimate=cost,
    )(x2, centers_rep, w_p, bias_row)

    out = out[:b_tokens, :d_out]
    return out.reshape(orig_shape[:-1] + (d_out,))


def faster_kan_reference(x, centers, weight, bias, *, gamma):
    """Pure-JAX reference for correctness check (same grid-major convention)."""
    d_in = x.shape[-1]
    k = centers.shape[0]
    x2 = x.reshape(-1, d_in)
    x_rep = jnp.concatenate([x2] * k, axis=1)
    c_rep = jnp.repeat(centers, d_in)[None, :]
    phi = jnp.exp(-gamma * (x_rep - c_rep) ** 2)
    out = phi @ weight + bias[None, :]
    return out.reshape(x.shape[:-1] + (weight.shape[1],))


if __name__ == "__main__":
    # Small shapes consistent with the module: (batch, seq, input_dim) -> (batch, seq, output_dim)
    batch, seq = 2, 8
    input_dim, output_dim = 32, 32
    num_grids = 8
    gamma = 1.0

    key = jax.random.PRNGKey(0)
    kx, kw, kb = jax.random.split(key, 3)

    x = jax.random.normal(kx, (batch, seq, input_dim), dtype=jnp.float32)

    # Deterministic parameter init (shapes from KANLayer(in=32, out=32, K grids)).
    centers = jnp.linspace(-1.0, 1.0, num_grids, dtype=jnp.float32)            # (K,)
    weight = (jax.random.normal(kw, (num_grids * input_dim, output_dim),
                                dtype=jnp.float32)
              * (1.0 / jnp.sqrt(num_grids * input_dim)))                        # (K*D_in, D_out)
    bias = jax.random.normal(kb, (output_dim,), dtype=jnp.float32) * 0.01       # (D_out,)

    y_ref = faster_kan_reference(x, centers, weight, bias, gamma=gamma)

    # Numerics-debug path: all-f32 (MXU/RBF/output), tight check.
    y_f32 = faster_kan_forward(x, centers, weight, bias, gamma=gamma,
                               mxu_dtype=jnp.float32, rbf_dtype=jnp.float32,
                               out_dtype=jnp.float32)
    y_f32 = jax.block_until_ready(y_f32)
    assert y_f32.shape == (batch, seq, output_dim)
    assert jnp.allclose(y_f32, y_ref, atol=1e-4, rtol=1e-4), "f32 path mismatch vs reference"

    # Default perf path: bf16 MXU operands, generation-auto RBF dtype, f32 out.
    y = faster_kan_forward(x, centers, weight, bias, gamma=gamma)
    y = jax.block_until_ready(y)
    assert y.shape == (batch, seq, output_dim)
    assert jnp.allclose(y, y_ref, atol=1.5e-1, rtol=1.5e-1), "bf16 path mismatch vs reference"

    # bf16-output path (halves HBM writeback when the consumer accepts bf16).
    y_bf16 = faster_kan_forward(x, centers, weight, bias, gamma=gamma,
                                out_dtype=jnp.bfloat16)
    y_bf16 = jax.block_until_ready(y_bf16)
    assert y_bf16.shape == (batch, seq, output_dim)
    assert jnp.allclose(y_bf16.astype(jnp.float32), y_ref, atol=2e-1, rtol=2e-1), \
        "bf16-output path mismatch vs reference"

    print("KERNEL_OK")
</pallas_src>

<mosaic_0001>
module attributes {stable_mosaic.version = 11 : i64} {
  func.func @_kan_kernel(%arg0: i32, %arg1: i32, %arg2: memref<16x32xf32, #tpu.memory_space<vmem>>, %arg3: memref<1x256xf32, #tpu.memory_space<vmem>>, %arg4: memref<256x128xf32, #tpu.memory_space<vmem>>, %arg5: memref<1x128xf32, #tpu.memory_space<vmem>>, %arg6: memref<16x128xf32, #tpu.memory_space<vmem>>) attributes {dimension_semantics = [#tpu.dimension_semantics<parallel>, #tpu.dimension_semantics<parallel>], iteration_bounds = array<i64: 1, 1>, scalar_prefetch = 0 : i64, scratch_operands = 0 : i64, tpu.core_type = #tpu.core_type<tc>, window_params = [{transform_indices = @transform_0, window_bounds = array<i64: 16, 32>}, {pipeline_mode = #tpu.pipeline_mode<synchronous>, transform_indices = @transform_1, window_bounds = array<i64: 1, 256>}, {transform_indices = @transform_2, window_bounds = array<i64: 256, 128>}, {transform_indices = @transform_3, window_bounds = array<i64: 1, 128>}, {transform_indices = @transform_4, window_bounds = array<i64: 16, 128>}]} {
    %c0 = arith.constant 0 : index
    %c0_0 = arith.constant 0 : index
    %0 = vector.load %arg2[%c0, %c0_0] : memref<16x32xf32, #tpu.memory_space<vmem>>, vector<16x32xf32>
    %cst = arith.constant 1.000000e+00 : f32
    %1 = vector.broadcast %cst : f32 to vector<16x32xf32>
    %2 = arith.mulf %0, %1 : vector<16x32xf32>
    %3 = tpu.concatenate %2, %2, %2, %2, %2, %2, %2, %2 in 1 : vector<16x32xf32>, vector<16x32xf32>, vector<16x32xf32>, vector<16x32xf32>, vector<16x32xf32>, vector<16x32xf32>, vector<16x32xf32>, vector<16x32xf32> -> vector<16x256xf32>
    %c0_1 = arith.constant 0 : index
    %c0_2 = arith.constant 0 : index
    %4 = vector.load %arg3[%c0_1, %c0_2] : memref<1x256xf32, #tpu.memory_space<vmem>>, vector<1x256xf32>
    %5 = vector.broadcast %4 : vector<1x256xf32> to vector<16x256xf32>
    %6 = arith.subf %3, %5 : vector<16x256xf32>
    %7 = arith.mulf %6, %6 : vector<16x256xf32>
    %cst_3 = arith.constant 0.000000e+00 : f32
    %8 = vector.broadcast %cst_3 : f32 to vector<16x256xf32>
    %9 = arith.subf %8, %7 : vector<16x256xf32>
    %10 = math.exp %9 : vector<16x256xf32>
    %c0_4 = arith.constant 0 : index
    %c0_5 = arith.constant 0 : index
    %11 = vector.load %arg4[%c0_4, %c0_5] : memref<256x128xf32, #tpu.memory_space<vmem>>, vector<256x128xf32>
    %cst_6 = arith.constant dense<0.000000e+00> : vector<16x128xf32>
    %12 = tpu.matmul %10, %11, %cst_6 {dimension_numbers = #tpu.dot_dimension_numbers<[1], [0], [0], [1], [0, 0, 1, 1], [], []>} : vector<16x256xf32>, vector<256x128xf32>, vector<16x128xf32> -> vector<16x128xf32>
    %c0_7 = arith.constant 0 : index
    %c0_8 = arith.constant 0 : index
    %13 = vector.load %arg5[%c0_7, %c0_8] : memref<1x128xf32, #tpu.memory_space<vmem>>, vector<1x128xf32>
    %14 = vector.broadcast %13 : vector<1x128xf32> to vector<16x128xf32>
    %15 = arith.addf %12, %14 : vector<16x128xf32>
    %c0_9 = arith.constant 0 : index
    %c0_10 = arith.constant 0 : index
    %16 = vector.load %arg6[%c0_9, %c0_10] : memref<16x128xf32, #tpu.memory_space<vmem>>, vector<16x128xf32>
    tpu.vector_store %arg6[%c0_9, %c0_10], %15 {strides = array<i32>} : memref<16x128xf32, #tpu.memory_space<vmem>>, vector<16x128xf32>,
    return
  }
  func.func @transform_0(%arg0: i32, %arg1: i32) -> (i32, i32) {
    %c0_i32 = arith.constant 0 : i32
    %c0_i32_0 = arith.constant 0 : i32
    return %arg1, %c0_i32 : i32, i32
  }
  func.func @transform_1(%arg0: i32, %arg1: i32) -> (i32, i32) {
    %c0_i32 = arith.constant 0 : i32
    %c0_i32_0 = arith.constant 0 : i32
    %c0_i32_1 = arith.constant 0 : i32
    return %c0_i32, %c0_i32_0 : i32, i32
  }
  func.func @transform_2(%arg0: i32, %arg1: i32) -> (i32, i32) {
    %c0_i32 = arith.constant 0 : i32
    %c0_i32_0 = arith.constant 0 : i32
    return %c0_i32, %arg0 : i32, i32
  }
  func.func @transform_3(%arg0: i32, %arg1: i32) -> (i32, i32) {
    %c0_i32 = arith.constant 0 : i32
    %c0_i32_0 = arith.constant 0 : i32
    return %c0_i32, %arg0 : i32, i32
  }
  func.func @transform_4(%arg0: i32, %arg1: i32) -> (i32, i32) {
    %c0_i32 = arith.constant 0 : i32
    return %arg1, %arg0 : i32, i32
  }
}

</mosaic_0001>

<llo_original>
// kernel: tpu_custom_call.1
$region0: #{tpu_custom_call.1}
  #allocation0 [shape = 'u32[]', space=smem, size = 0x4, offset = 0x4, fixed_abs, tag = 'smem constant byte address 0x4 - core index']
  #allocation1 [shape = 'u32[72,128]{1,0:T(1,128)}', space=vmem, size = 0x9000, scoped, tag = 'internal scratch']
  %s0 = inlined_call_operand.hbm [shape: f32[16,32], index: 0, kind: input, shape index: {}]
  %s1 = inlined_call_operand.hbm [shape: f32[1,256], index: 1, kind: input, shape index: {}]
  %s2 = inlined_call_operand.hbm [shape: f32[256,128], index: 2, kind: input, shape index: {}]
  %s3 = inlined_call_operand.vmem [shape: f32[1,128], index: 3, kind: input, shape index: {}]
  %s4 = inlined_call_operand.hbm [shape: f32[16,128], index: 4, kind: output, shape index: {}]
  %s5 = sld [smem:[#allocation0]]
  $region38: #{tpu_custom_call.1} parent=0
    _
  %s7 = ssub.s32 1, %s5
  %s8 = scalar_select 0, %s7, %s5
  $region1: #{tpu_custom_call.1} parent=0
    #allocation2 [shape = 'u8[8192]{0}', space=vmem, size = 0x2000, scoped, tag = 'input window, operand 0, single buffered']
    #allocation3 [shape = 's32[1]{0}', space=sflag, size = 0x4, scoped, tag = 'scoped memory for tpu_custom_call.1']
    #allocation4 [shape = 's32[1]{0}', space=sflag, size = 0x4, scoped, tag = 'scoped memory for tpu_custom_call.1']
    #allocation5 [shape = 'u8[1024]{0}', space=vmem, size = 0x400, scoped, tag = 'input window, operand 1, single buffered']
    #allocation6 [shape = 's32[1]{0}', space=sflag, size = 0x4, scoped, tag = 'scoped memory for tpu_custom_call.1']
    #allocation7 [shape = 'u8[131072]{0}', space=vmem, size = 0x20000, scoped, tag = 'input window, operand 2, single buffered']
    #allocation8 [shape = 'u8[8192]{0}', space=vmem, size = 0x2000, scoped, tag = 'output window, operand 0, single buffered']
    %9 = vsyncpa [#allocation3], 0
    %10 = vsyncpa [#allocation6], 0
    %11 = vsyncpa [#allocation4], 0
    // Predicated region
    $region2: #{tpu_custom_call.1} parent=1 // pred_check
      _
    $region3: #{tpu_custom_call.1} parent=1 // pred_check_branch
      %13 = sbr.rel (0) target = $region5
    $region4: #{tpu_custom_call.1} parent=1 // pred_region
      %15 = vsyncadd [#allocation3], 0
      %s16 = sshll.u32 %s0, 4
      %s17 = int_to_ptr.hbm [resolvable:$true] %s16
      %s18 = sshll.u32 [#allocation2], 4
      %s19 = int_to_ptr.vmem [resolvable:$true] %s18
      %24 = dma.hbm_to_vmem [thread:$0]  %s17, 256, %s19, [#allocation3], 128, 128, 8
    $region5: #{tpu_custom_call.1} parent=1 // pred_fallthru
      _
    // Predicated region
    $region6: #{tpu_custom_call.1} parent=1 // pred_check
      _
    $region7: #{tpu_custom_call.1} parent=1 // pred_check_branch
      %26 = sbr.rel (0) target = $region9
    $region8: #{tpu_custom_call.1} parent=1 // pred_region
      %28 = vsyncadd [#allocation6], 0
      %s30 = sshll.u32 %s1, 4
      %s31 = int_to_ptr.hbm [resolvable:$true] %s30
      %s32 = sshll.u32 [#allocation5], 4
      %s33 = int_to_ptr.vmem [resolvable:$true] %s32
      %35 = dma.hbm_to_vmem [thread:$0]  %s31, 32, %s33, [#allocation6]
    $region9: #{tpu_custom_call.1} parent=1 // pred_fallthru
      _
    // Predicated region
    $region10: #{tpu_custom_call.1} parent=1 // pred_check
      _
    $region11: #{tpu_custom_call.1} parent=1 // pred_check_branch
      %37 = sbr.rel (0) target = $region13
    $region12: #{tpu_custom_call.1} parent=1 // pred_region
      %39 = vsyncadd [#allocation6], 0
      %s40 = sshll.u32 %s2, 4
      %s41 = int_to_ptr.hbm [resolvable:$true] %s40
      %s42 = sshll.u32 [#allocation7], 4
      %s43 = int_to_ptr.vmem [resolvable:$true] %s42
      %48 = dma.hbm_to_vmem [thread:$0]  %s41, 4096, %s43, [#allocation6], 128, 128, 8
    $region13: #{tpu_custom_call.1} parent=1 // pred_fallthru
      _
    // Predicated region
    $region14: #{tpu_custom_call.1} parent=1 // pred_check
      _
    $region15: #{tpu_custom_call.1} parent=1 // pred_check_branch
      %50 = sbr.rel (0) target = $region17
    $region16: #{tpu_custom_call.1} parent=1 // pred_region
      _
    $region17: #{tpu_custom_call.1} parent=1 // pred_fallthru
      _
    // Predicated region
    $region18: #{tpu_custom_call.1} parent=1 // pred_check
      _
    $region19: #{tpu_custom_call.1} parent=1 // pred_check_branch
      %52 = sbr.rel (0) target = $region21
    $region20: #{tpu_custom_call.1} parent=1 // pred_region
      %54 = dma.done [#allocation3], 256
    $region21: #{tpu_custom_call.1} parent=1 // pred_fallthru
      _
    // Predicated region
    $region22: #{tpu_custom_call.1} parent=1 // pred_check
      _
    $region23: #{tpu_custom_call.1} parent=1 // pred_check_branch
      %56 = sbr.rel (0) target = $region25
    $region24: #{tpu_custom_call.1} parent=1 // pred_region
      %58 = dma.done [#allocation6], 32
    $region25: #{tpu_custom_call.1} parent=1 // pred_fallthru
      _
    // Predicated region
    $region26: #{tpu_custom_call.1} parent=1 // pred_check
      _
    $region27: #{tpu_custom_call.1} parent=1 // pred_check_branch
      %60 = sbr.rel (0) target = $region29
    $region28: #{tpu_custom_call.1} parent=1 // pred_region
      %62 = dma.done [#allocation6], 4096
    $region29: #{tpu_custom_call.1} parent=1 // pred_fallthru
      _
    %v63 = vld [vmem:[#allocation2] sm:$0xff]
    %v64 = vld [vmem:[#allocation2 + $0x8] sm:$0xff]
    %67 = vrot.lane.b32.xlu0 %v63, 32
    %v68 = vpop.permute.xlu0 %67
    %69 = vrot.lane.b32.xlu0 %v64, 32
    %v70 = vpop.permute.xlu0 %69
    %73 = vrot.lane.b32.xlu0 %v63, 64
    %v74 = vpop.permute.xlu0 %73
    %75 = vrot.lane.b32.xlu0 %v64, 64
    %v76 = vpop.permute.xlu0 %75
    %79 = vrot.lane.b32.xlu0 %v63, 96
    %v80 = vpop.permute.xlu0 %79
    %81 = vrot.lane.b32.xlu0 %v64, 96
    %v82 = vpop.permute.xlu0 %81
    %vm85 = vcmask 261120
    %v86 = vsel %vm85, %v63, %v68
    %v87 = vsel %vm85, %v64, %v70
    %vm88 = vcmask 523264
    %v89 = vsel %vm88, %v86, %v74
    %v90 = vsel %vm88, %v87, %v76
    %vm91 = vcmask 785408
    %v92 = vsel %vm91, %v89, %v80
    %v93 = vsel %vm91, %v90, %v82
    %v94 = vld [vmem:[#allocation5] sm:$0x3]
    %v96 = vperm.slane %v94, 0
    %v97 = vperm.slane %v94, 1
    %v100 = vsub.f32 %v92, %v96
    %v101 = vsub.f32 %v92, %v97
    %v102 = vsub.f32 %v93, %v96
    %v103 = vsub.f32 %v93, %v97
    %v104 = vmul.f32 %v100, %v100
    %v105 = vmul.f32 %v101, %v101
    %v106 = vmul.f32 %v102, %v102
    %v107 = vmul.f32 %v103, %v103
    %v108 = vsub.f32 0.0, %v104
    %v109 = vsub.f32 0.0, %v105
    %v110 = vsub.f32 0.0, %v106
    %v111 = vsub.f32 0.0, %v107
    %v112 = vmul.f32 %v108, 1.442695
    %v113 = vpow.pop %v112
    %v114 = vmul.f32 %v109, 1.442695
    %v115 = vpow.pop %v114
    %v116 = vmul.f32 %v110, 1.442695
    %v117 = vpow.pop %v116
    %v118 = vmul.f32 %v111, 1.442695
    %v119 = vpow.pop %v118
    %v120 = vld [vmem:[#allocation7] sm:$0xff]
    %v121 = vld [vmem:[#allocation7 + $0x8] sm:$0xff]
    %v122 = vld [vmem:[#allocation7 + $0x10] sm:$0xff]
    %v123 = vld [vmem:[#allocation7 + $0x18] sm:$0xff]
    %v124 = vld [vmem:[#allocation7 + $0x20] sm:$0xff]
    %v125 = vld [vmem:[#allocation7 + $0x28] sm:$0xff]
    %v126 = vld [vmem:[#allocation7 + $0x30] sm:$0xff]
    %v127 = vld [vmem:[#allocation7 + $0x38] sm:$0xff]
    %v128 = vld [vmem:[#allocation7 + $0x40] sm:$0xff]
    %v129 = vld [vmem:[#allocation7 + $0x48] sm:$0xff]
    %v130 = vld [vmem:[#allocation7 + $0x50] sm:$0xff]
    %v131 = vld [vmem:[#allocation7 + $0x58] sm:$0xff]
    %v132 = vld [vmem:[#allocation7 + $0x60] sm:$0xff]
    %v133 = vld [vmem:[#allocation7 + $0x68] sm:$0xff]
    %v134 = vld [vmem:[#allocation7 + $0x70] sm:$0xff]
    %v135 = vld [vmem:[#allocation7 + $0x78] sm:$0xff]
    %v136 = vld [vmem:[#allocation7 + $0x80] sm:$0xff]
    %v137 = vld [vmem:[#allocation7 + $0x88] sm:$0xff]
    %v138 = vld [vmem:[#allocation7 + $0x90] sm:$0xff]
    %v139 = vld [vmem:[#allocation7 + $0x98] sm:$0xff]
    %v140 = vld [vmem:[#allocation7 + $0xa0] sm:$0xff]
    %v141 = vld [vmem:[#allocation7 + $0xa8] sm:$0xff]
    %v142 = vld [vmem:[#allocation7 + $0xb0] sm:$0xff]
    %v143 = vld [vmem:[#allocation7 + $0xb8] sm:$0xff]
    %v144 = vld [vmem:[#allocation7 + $0xc0] sm:$0xff]
    %v145 = vld [vmem:[#allocation7 + $0xc8] sm:$0xff]
    %v146 = vld [vmem:[#allocation7 + $0xd0] sm:$0xff]
    %v147 = vld [vmem:[#allocation7 + $0xd8] sm:$0xff]
    %v148 = vld [vmem:[#allocation7 + $0xe0] sm:$0xff]
    %v149 = vld [vmem:[#allocation7 + $0xe8] sm:$0xff]
    %v150 = vld [vmem:[#allocation7 + $0xf0] sm:$0xff]
    %v151 = vld [vmem:[#allocation7 + $0xf8] sm:$0xff]
    %v152 = vld [vmem:[%s3] sm:$0x1]
    %v154 = vperm.slane %v152, 0
    %156 = vmatpush.msra.mxu0 %v135
    %157 = vmatpush.msra.mxu0 %v134
    %158 = vmatpush.msra.mxu0 %v133
    %159 = vmatpush.msra.mxu0 %v132
    %160 = vmatpush.msra.mxu0 %v131
    %161 = vmatpush.msra.mxu0 %v130
    %162 = vmatpush.msra.mxu0 %v129
    %163 = vmatpush.msra.mxu0 %v128
    %164 = vmatpush.msra.mxu0 %v127
    %165 = vmatpush.msra.mxu0 %v126
    %166 = vmatpush.msra.mxu0 %v125
    %167 = vmatpush.msra.mxu0 %v124
    %168 = vmatpush.msra.mxu0 %v123
    %169 = vmatpush.msra.mxu0 %v122
    %170 = vmatpush.msra.mxu0 %v121
    %171 = vmatpush.msra.mxu0 %v120
    %172 = vmatmul.f32.gmra.mxu0 %v113
    %v173 = vpop.f32.mrf.mxu0
    %v174 = vadd.f32 %v154, %v173
    %175 = vmatmul.f32.gmra.mxu0 %v117
    %v176 = vpop.f32.mrf.mxu0
    %v177 = vadd.f32 %v154, %v176
    %178 = vdwg.mxu0
    %179 = vmatpush.msra.mxu0 %v151
    %180 = vmatpush.msra.mxu0 %v150
    %181 = vmatpush.msra.mxu0 %v149
    %182 = vmatpush.msra.mxu0 %v148
    %183 = vmatpush.msra.mxu0 %v147
    %184 = vmatpush.msra.mxu0 %v146
    %185 = vmatpush.msra.mxu0 %v145
    %186 = vmatpush.msra.mxu0 %v144
    %187 = vmatpush.msra.mxu0 %v143
    %188 = vmatpush.msra.mxu0 %v142
    %189 = vmatpush.msra.mxu0 %v141
    %190 = vmatpush.msra.mxu0 %v140
    %191 = vmatpush.msra.mxu0 %v139
    %192 = vmatpush.msra.mxu0 %v138
    %193 = vmatpush.msra.mxu0 %v137
    %194 = vmatpush.msra.mxu0 %v136
    %195 = vmatmul.f32.gmra.mxu0 %v115
    %v196 = vpop.f32.mrf.mxu0
    %v197 = vadd.f32 %v174, %v196
    %198 = vmatmul.f32.gmra.mxu0 %v119
    %v199 = vpop.f32.mrf.mxu0
    %v200 = vadd.f32 %v177, %v199
    %201 = vdwg.mxu0
    %202 = vst [vmem:[#allocation8] sm:$0xff] %v197
    %203 = vst [vmem:[#allocation8 + $0x8] sm:$0xff] %v200
    // Predicated region
    $region30: #{tpu_custom_call.1} parent=1 // pred_check
      _
    $region31: #{tpu_custom_call.1} parent=1 // pred_check_branch
      %205 = sbr.rel (0) target = $region33
    $region32: #{tpu_custom_call.1} parent=1 // pred_region
      %207 = vsyncadd [#allocation4], 0
      %s208 = sshll.u32 [#allocation8], 4
      %s209 = int_to_ptr.vmem [resolvable:$true] %s208
      %s210 = sshll.u32 %s4, 4
      %s211 = int_to_ptr.hbm [resolvable:$true] %s210
      %216 = dma.vmem_to_hbm [thread:$0]  %s209, 256, %s211, [#allocation4], 128, 128, 8
    $region33: #{tpu_custom_call.1} parent=1 // pred_fallthru
      _
    // Predicated region
    $region34: #{tpu_custom_call.1} parent=1 // pred_check
      _
    $region35: #{tpu_custom_call.1} parent=1 // pred_check_branch
      %218 = sbr.rel (0) target = $region37
    $region36: #{tpu_custom_call.1} parent=1 // pred_region
      %220 = dma.done [#allocation4], 256
    $region37: #{tpu_custom_call.1} parent=1 // pred_fallthru
      _
    %221 = vsyncpa [#allocation3], 1
    %222 = vsyncpa [#allocation6], 1
    %223 = vsyncpa [#allocation4], 1

</llo_original>
